<compile_context>
chip_gen: v5e
topology: v5e:2x2
jax: 0.10.0
libtpu: 0.0.40
codegen_flags: <defaults>
</compile_context>

<pallas_src>
import functools

import jax
import jax.numpy as jnp
from jax import lax
from jax.experimental import pallas as pl
from jax.experimental.pallas import tpu as pltpu

# ----------------------------- config ---------------------------------------
BATCH = 2
SEQ = 8
INPUT_DIM = 32
HIDDEN_DIM = 128
OUTPUT_DIM = 16
NUM_HIDDEN_LAYERS = 2
LN_EPS = 1e-5
OUT_PAD = 128        # lane-dense padded output width (multiple of 128)
MAX_ROW_TILE = 512   # cap so activations stay tiny vs VMEM on every generation


def _choose_row_tile(m: int) -> int:
    """Multiple of 8, <= MAX_ROW_TILE, and >=2 tiles whenever M allows (v7x)."""
    if m <= 8:
        return 8
    half = (m + 1) // 2                       # prefer at least two parallel tiles
    return min(MAX_ROW_TILE, ((half + 7) // 8) * 8)


# ----------------------------- kernel ---------------------------------------
def residual_mlp_kernel(x_ref, w_in_ref, b_in_ref,
                        w_h_ref, b_h_ref, g_h_ref, beta_h_ref,
                        w_out_ref, b_out_ref, o_ref):
    w_dtype = w_in_ref.dtype                  # bf16 (default) or f32 matmul operands
    inv_h = 1.0 / HIDDEN_DIM
    num_layers = w_h_ref.shape[0]

    # input layer: (tm, D_in) @ (D_in, H) + (1, H), f32 accumulation
    x = x_ref[...].astype(w_dtype)
    h = jnp.dot(x, w_in_ref[...], preferred_element_type=jnp.float32) + b_in_ref[...]

    # hidden residual blocks: h = h + ReLU(LayerNorm(h @ W + b))
    for l in range(num_layers):
        z = jnp.dot(h.astype(w_dtype), w_h_ref[l],
                    preferred_element_type=jnp.float32) + b_h_ref[l]

        # two-pass mean / centered variance (matches torch LayerNorm, f32)
        mean = jnp.sum(z, axis=-1, keepdims=True) * inv_h
        zc = z - mean
        var = jnp.sum(zc * zc, axis=-1, keepdims=True) * inv_h

        # fused normalize + affine + ReLU + residual (z/zc die right here)
        h = h + jnp.maximum(
            zc * (lax.rsqrt(var + LN_EPS) * g_h_ref[l]) + beta_h_ref[l], 0.0)
        # TODO(synk): Dropout is identity (dropout=0.0 in the reference config).

    # output layer into the lane-dense (OUT_PAD-wide) padded output
    out = jnp.dot(h.astype(w_dtype), w_out_ref[...],
                  preferred_element_type=jnp.float32) + b_out_ref[...]
    o_ref[...] = out.astype(o_ref.dtype)


# ----------------------------- params ----------------------------------------
def init_params(key):
    ks = jax.random.split(key, 8)

    # input layer: PyTorch default Linear init, weight stored transposed (in, out)
    bound_in = 1.0 / jnp.sqrt(INPUT_DIM)
    w_in = jax.random.uniform(ks[0], (INPUT_DIM, HIDDEN_DIM),
                              minval=-bound_in, maxval=bound_in, dtype=jnp.float32)
    b_in = jax.random.uniform(ks[1], (1, HIDDEN_DIM),
                              minval=-bound_in, maxval=bound_in, dtype=jnp.float32)

    # hidden layers: xavier_uniform_ weights, zero biases (as in module __init__)
    xav = jnp.sqrt(6.0 / (HIDDEN_DIM + HIDDEN_DIM))
    w_h = jax.random.uniform(ks[2], (NUM_HIDDEN_LAYERS, HIDDEN_DIM, HIDDEN_DIM),
                             minval=-xav, maxval=xav, dtype=jnp.float32)
    b_h = jnp.zeros((NUM_HIDDEN_LAYERS, 1, HIDDEN_DIM), jnp.float32)
    g_h = jnp.ones((NUM_HIDDEN_LAYERS, 1, HIDDEN_DIM), jnp.float32)      # LN weight
    beta_h = jnp.zeros((NUM_HIDDEN_LAYERS, 1, HIDDEN_DIM), jnp.float32)  # LN bias

    # output layer: PyTorch default init, weight transposed
    bound_out = 1.0 / jnp.sqrt(HIDDEN_DIM)
    w_out = jax.random.uniform(ks[3], (HIDDEN_DIM, OUTPUT_DIM),
                               minval=-bound_out, maxval=bound_out, dtype=jnp.float32)
    b_out = jax.random.uniform(ks[4], (1, OUTPUT_DIM),
                               minval=-bound_out, maxval=bound_out, dtype=jnp.float32)

    return (w_in, b_in, w_h, b_h, g_h, beta_h, w_out, b_out)


def prepare_params(params, param_dtype=jnp.bfloat16):
    """One-time, out-of-hot-path weight prep: pad output weights to 128 lanes
    and cast matmul operands to `param_dtype` (default bf16; f32 accumulation
    and f32 LayerNorm math happen in-kernel regardless)."""
    (w_in, b_in, w_h, b_h, g_h, beta_h, w_out, b_out) = params

    w_out_p = jnp.zeros((HIDDEN_DIM, OUT_PAD), jnp.float32).at[:, :OUTPUT_DIM].set(w_out)
    b_out_p = jnp.zeros((1, OUT_PAD), jnp.float32).at[:, :OUTPUT_DIM].set(b_out)

    prepared = (w_in.astype(param_dtype), b_in,
                w_h.astype(param_dtype), b_h, g_h, beta_h,
                w_out_p.astype(param_dtype), b_out_p)
    return jax.tree_util.tree_map(jax.block_until_ready, prepared)


# ----------------------------- wrapper ---------------------------------------
@jax.jit
def residual_mlp(x, prepared):
    """x: (B, S, INPUT_DIM) f32 -> (B, S, OUTPUT_DIM) f32. `prepared` from prepare_params."""
    B, S, D = x.shape
    M = B * S
    x2 = x.reshape(M, D)

    row_tile = _choose_row_tile(M)
    n_tiles = pl.cdiv(M, row_tile)
    M_pad = n_tiles * row_tile
    if M_pad != M:
        x2 = jnp.pad(x2, ((0, M_pad - M), (0, 0)))

    (w_in, b_in, w_h, b_h, g_h, beta_h, w_out, b_out) = prepared
    L = w_h.shape[0]

    out2 = pl.pallas_call(
        residual_mlp_kernel,
        out_shape=jax.ShapeDtypeStruct((M_pad, OUT_PAD), jnp.float32),
        grid_spec=pltpu.PrefetchScalarGridSpec(
            num_scalar_prefetch=0,
            grid=(n_tiles,),
            in_specs=[
                pl.BlockSpec((row_tile, D), lambda i: (i, 0)),                    # x
                pl.BlockSpec((D, HIDDEN_DIM), lambda i: (0, 0)),                  # w_in
                pl.BlockSpec((1, HIDDEN_DIM), lambda i: (0, 0)),                  # b_in
                pl.BlockSpec((L, HIDDEN_DIM, HIDDEN_DIM), lambda i: (0, 0, 0)),   # w_h
                pl.BlockSpec((L, 1, HIDDEN_DIM), lambda i: (0, 0, 0)),            # b_h
                pl.BlockSpec((L, 1, HIDDEN_DIM), lambda i: (0, 0, 0)),            # ln gamma
                pl.BlockSpec((L, 1, HIDDEN_DIM), lambda i: (0, 0, 0)),            # ln beta
                pl.BlockSpec((HIDDEN_DIM, OUT_PAD), lambda i: (0, 0)),            # w_out (padded)
                pl.BlockSpec((1, OUT_PAD), lambda i: (0, 0)),                     # b_out (padded)
            ],
            out_specs=pl.BlockSpec((row_tile, OUT_PAD), lambda i: (i, 0)),
        ),
        compiler_params=pltpu.CompilerParams(
            dimension_semantics=("parallel",)),
    )(x2, w_in, b_in, w_h, b_h, g_h, beta_h, w_out, b_out)

    return out2[:M, :OUTPUT_DIM].reshape(B, S, OUTPUT_DIM)


# ----------------------------- reference --------------------------------------
def residual_mlp_ref(x, params):
    (w_in, b_in, w_h, b_h, g_h, beta_h, w_out, b_out) = params
    h = x @ w_in + b_in[0]
    for l in range(NUM_HIDDEN_LAYERS):
        z = h @ w_h[l] + b_h[l, 0]
        mean = jnp.mean(z, axis=-1, keepdims=True)
        var = jnp.mean((z - mean) ** 2, axis=-1, keepdims=True)
        zn = (z - mean) * lax.rsqrt(var + LN_EPS)
        zn = zn * g_h[l, 0] + beta_h[l, 0]
        h = h + jnp.maximum(zn, 0.0)
    return h @ w_out + b_out[0]


def _roundtrip_weights(params, dtype):
    """Cast matmul weights through `dtype` (and back to f32) for the reference."""
    (w_in, b_in, w_h, b_h, g_h, beta_h, w_out, b_out) = params
    rt = lambda w: w.astype(dtype).astype(jnp.float32)
    return (rt(w_in), b_in, rt(w_h), b_h, g_h, beta_h, rt(w_out), b_out)


# ----------------------------- main -------------------------------------------
if __name__ == "__main__":
    key = jax.random.PRNGKey(0)
    kx, kp = jax.random.split(key)
    x = jax.random.normal(kx, (BATCH, SEQ, INPUT_DIM), dtype=jnp.float32)
    params = init_params(kp)

    # f32-operand path (tight correctness check)
    prepared_f32 = prepare_params(params, param_dtype=jnp.float32)
    out = jax.block_until_ready(residual_mlp(x, prepared_f32))
    ref = residual_mlp_ref(x, params)
    assert out.shape == (BATCH, SEQ, OUTPUT_DIM)
    assert jnp.allclose(out, ref, atol=1e-4, rtol=1e-4), "f32 mismatch vs reference"

    # bf16-operand default path (f32 accumulation, f32 elementwise) — fast path
    prepared_bf16 = prepare_params(params)   # default param_dtype=bf16
    out_bf16 = jax.block_until_ready(residual_mlp(x, prepared_bf16))
    ref_bf16 = residual_mlp_ref(x, _roundtrip_weights(params, jnp.bfloat16))
    assert jnp.allclose(out_bf16, ref_bf16, atol=1e-1, rtol=1e-1), \
        "bf16 mismatch vs reference"

    print("KERNEL_OK")
</pallas_src>

<mosaic_0001>
module attributes {stable_mosaic.version = 11 : i64} {
  func.func @residual_mlp_kernel(%arg0: i32, %arg1: memref<8x32xf32, #tpu.memory_space<vmem>>, %arg2: memref<32x128xf32, #tpu.memory_space<vmem>>, %arg3: memref<1x128xf32, #tpu.memory_space<vmem>>, %arg4: memref<2x128x128xf32, #tpu.memory_space<vmem>>, %arg5: memref<2x1x128xf32, #tpu.memory_space<vmem>>, %arg6: memref<2x1x128xf32, #tpu.memory_space<vmem>>, %arg7: memref<2x1x128xf32, #tpu.memory_space<vmem>>, %arg8: memref<128x128xf32, #tpu.memory_space<vmem>>, %arg9: memref<1x128xf32, #tpu.memory_space<vmem>>, %arg10: memref<8x128xf32, #tpu.memory_space<vmem>>) attributes {dimension_semantics = [#tpu.dimension_semantics<parallel>], iteration_bounds = array<i64: 2>, scalar_prefetch = 0 : i64, scratch_operands = 0 : i64, tpu.core_type = #tpu.core_type<tc>, window_params = [{transform_indices = @transform_0, window_bounds = array<i64: 8, 32>}, {pipeline_mode = #tpu.pipeline_mode<synchronous>, transform_indices = @transform_1, window_bounds = array<i64: 32, 128>}, {pipeline_mode = #tpu.pipeline_mode<synchronous>, transform_indices = @transform_2, window_bounds = array<i64: 1, 128>}, {pipeline_mode = #tpu.pipeline_mode<synchronous>, transform_indices = @transform_3, window_bounds = array<i64: 2, 128, 128>}, {pipeline_mode = #tpu.pipeline_mode<synchronous>, transform_indices = @transform_4, window_bounds = array<i64: 2, 1, 128>}, {pipeline_mode = #tpu.pipeline_mode<synchronous>, transform_indices = @transform_5, window_bounds = array<i64: 2, 1, 128>}, {pipeline_mode = #tpu.pipeline_mode<synchronous>, transform_indices = @transform_6, window_bounds = array<i64: 2, 1, 128>}, {pipeline_mode = #tpu.pipeline_mode<synchronous>, transform_indices = @transform_7, window_bounds = array<i64: 128, 128>}, {pipeline_mode = #tpu.pipeline_mode<synchronous>, transform_indices = @transform_8, window_bounds = array<i64: 1, 128>}, {transform_indices = @transform_9, window_bounds = array<i64: 8, 128>}]} {
    %c0 = arith.constant 0 : index
    %c0_0 = arith.constant 0 : index
    %0 = vector.load %arg1[%c0, %c0_0] : memref<8x32xf32, #tpu.memory_space<vmem>>, vector<8x32xf32>
    %c0_1 = arith.constant 0 : index
    %c0_2 = arith.constant 0 : index
    %1 = vector.load %arg2[%c0_1, %c0_2] : memref<32x128xf32, #tpu.memory_space<vmem>>, vector<32x128xf32>
    %cst = arith.constant dense<0.000000e+00> : vector<8x128xf32>
    %2 = tpu.matmul %0, %1, %cst {dimension_numbers = #tpu.dot_dimension_numbers<[1], [0], [0], [1], [0, 0, 1, 1], [], []>} : vector<8x32xf32>, vector<32x128xf32>, vector<8x128xf32> -> vector<8x128xf32>
    %c0_3 = arith.constant 0 : index
    %c0_4 = arith.constant 0 : index
    %3 = vector.load %arg3[%c0_3, %c0_4] : memref<1x128xf32, #tpu.memory_space<vmem>>, vector<1x128xf32>
    %4 = vector.broadcast %3 : vector<1x128xf32> to vector<8x128xf32>
    %5 = arith.addf %2, %4 : vector<8x128xf32>
    %c0_5 = arith.constant 0 : index
    %c0_6 = arith.constant 0 : index
    %c0_7 = arith.constant 0 : index
    %6 = vector.load %arg4[%c0_5, %c0_6, %c0_7] : memref<2x128x128xf32, #tpu.memory_space<vmem>>, vector<1x128x128xf32>
    %7 = vector.shape_cast %6 : vector<1x128x128xf32> to vector<128x128xf32>
    %cst_8 = arith.constant dense<0.000000e+00> : vector<8x128xf32>
    %8 = tpu.matmul %5, %7, %cst_8 {dimension_numbers = #tpu.dot_dimension_numbers<[1], [0], [0], [1], [0, 0, 1, 1], [], []>} : vector<8x128xf32>, vector<128x128xf32>, vector<8x128xf32> -> vector<8x128xf32>
    %c0_9 = arith.constant 0 : index
    %c0_10 = arith.constant 0 : index
    %c0_11 = arith.constant 0 : index
    %9 = vector.load %arg5[%c0_9, %c0_10, %c0_11] : memref<2x1x128xf32, #tpu.memory_space<vmem>>, vector<1x1x128xf32>
    %10 = vector.shape_cast %9 : vector<1x1x128xf32> to vector<1x128xf32>
    %11 = vector.broadcast %10 : vector<1x128xf32> to vector<8x128xf32>
    %12 = arith.addf %8, %11 : vector<8x128xf32>
    %cst_12 = arith.constant dense<0.000000e+00> : vector<8xf32>
    %13 = vector.multi_reduction <add>, %12, %cst_12 [1] : vector<8x128xf32> to vector<8xf32>
    %14 = vector.shape_cast %13 : vector<8xf32> to vector<8x1xf32>
    %cst_13 = arith.constant 7.812500e-03 : f32
    %15 = vector.broadcast %cst_13 : f32 to vector<8x1xf32>
    %16 = arith.mulf %14, %15 : vector<8x1xf32>
    %17 = vector.broadcast %16 : vector<8x1xf32> to vector<8x128xf32>
    %18 = arith.subf %12, %17 : vector<8x128xf32>
    %19 = arith.mulf %18, %18 : vector<8x128xf32>
    %cst_14 = arith.constant dense<0.000000e+00> : vector<8xf32>
    %20 = vector.multi_reduction <add>, %19, %cst_14 [1] : vector<8x128xf32> to vector<8xf32>
    %21 = vector.shape_cast %20 : vector<8xf32> to vector<8x1xf32>
    %cst_15 = arith.constant 7.812500e-03 : f32
    %22 = vector.broadcast %cst_15 : f32 to vector<8x1xf32>
    %23 = arith.mulf %21, %22 : vector<8x1xf32>
    %cst_16 = arith.constant 9.99999974E-6 : f32
    %24 = vector.broadcast %cst_16 : f32 to vector<8x1xf32>
    %25 = arith.addf %23, %24 : vector<8x1xf32>
    %26 = math.rsqrt %25 : vector<8x1xf32>
    %c0_17 = arith.constant 0 : index
    %c0_18 = arith.constant 0 : index
    %c0_19 = arith.constant 0 : index
    %27 = vector.load %arg6[%c0_17, %c0_18, %c0_19] : memref<2x1x128xf32, #tpu.memory_space<vmem>>, vector<1x1x128xf32>
    %28 = vector.shape_cast %27 : vector<1x1x128xf32> to vector<1x128xf32>
    %29 = vector.broadcast %26 : vector<8x1xf32> to vector<8x128xf32>
    %30 = vector.broadcast %28 : vector<1x128xf32> to vector<8x128xf32>
    %31 = arith.mulf %29, %30 : vector<8x128xf32>
    %32 = arith.mulf %18, %31 : vector<8x128xf32>
    %c0_20 = arith.constant 0 : index
    %c0_21 = arith.constant 0 : index
    %c0_22 = arith.constant 0 : index
    %33 = vector.load %arg7[%c0_20, %c0_21, %c0_22] : memref<2x1x128xf32, #tpu.memory_space<vmem>>, vector<1x1x128xf32>
    %34 = vector.shape_cast %33 : vector<1x1x128xf32> to vector<1x128xf32>
    %35 = vector.broadcast %34 : vector<1x128xf32> to vector<8x128xf32>
    %36 = arith.addf %32, %35 : vector<8x128xf32>
    %cst_23 = arith.constant 0.000000e+00 : f32
    %37 = vector.broadcast %cst_23 : f32 to vector<8x128xf32>
    %38 = arith.maximumf %36, %37 : vector<8x128xf32>
    %39 = arith.addf %5, %38 : vector<8x128xf32>
    %c1 = arith.constant 1 : index
    %c0_24 = arith.constant 0 : index
    %c0_25 = arith.constant 0 : index
    %40 = vector.load %arg4[%c1, %c0_24, %c0_25] : memref<2x128x128xf32, #tpu.memory_space<vmem>>, vector<1x128x128xf32>
    %41 = vector.shape_cast %40 : vector<1x128x128xf32> to vector<128x128xf32>
    %cst_26 = arith.constant dense<0.000000e+00> : vector<8x128xf32>
    %42 = tpu.matmul %39, %41, %cst_26 {dimension_numbers = #tpu.dot_dimension_numbers<[1], [0], [0], [1], [0, 0, 1, 1], [], []>} : vector<8x128xf32>, vector<128x128xf32>, vector<8x128xf32> -> vector<8x128xf32>
    %c1_27 = arith.constant 1 : index
    %c0_28 = arith.constant 0 : index
    %c0_29 = arith.constant 0 : index
    %43 = vector.load %arg5[%c1_27, %c0_28, %c0_29] : memref<2x1x128xf32, #tpu.memory_space<vmem>>, vector<1x1x128xf32>
    %44 = vector.shape_cast %43 : vector<1x1x128xf32> to vector<1x128xf32>
    %45 = vector.broadcast %44 : vector<1x128xf32> to vector<8x128xf32>
    %46 = arith.addf %42, %45 : vector<8x128xf32>
    %cst_30 = arith.constant dense<0.000000e+00> : vector<8xf32>
    %47 = vector.multi_reduction <add>, %46, %cst_30 [1] : vector<8x128xf32> to vector<8xf32>
    %48 = vector.shape_cast %47 : vector<8xf32> to vector<8x1xf32>
    %cst_31 = arith.constant 7.812500e-03 : f32
    %49 = vector.broadcast %cst_31 : f32 to vector<8x1xf32>
    %50 = arith.mulf %48, %49 : vector<8x1xf32>
    %51 = vector.broadcast %50 : vector<8x1xf32> to vector<8x128xf32>
    %52 = arith.subf %46, %51 : vector<8x128xf32>
    %53 = arith.mulf %52, %52 : vector<8x128xf32>
    %cst_32 = arith.constant dense<0.000000e+00> : vector<8xf32>
    %54 = vector.multi_reduction <add>, %53, %cst_32 [1] : vector<8x128xf32> to vector<8xf32>
    %55 = vector.shape_cast %54 : vector<8xf32> to vector<8x1xf32>
    %cst_33 = arith.constant 7.812500e-03 : f32
    %56 = vector.broadcast %cst_33 : f32 to vector<8x1xf32>
    %57 = arith.mulf %55, %56 : vector<8x1xf32>
    %cst_34 = arith.constant 9.99999974E-6 : f32
    %58 = vector.broadcast %cst_34 : f32 to vector<8x1xf32>
    %59 = arith.addf %57, %58 : vector<8x1xf32>
    %60 = math.rsqrt %59 : vector<8x1xf32>
    %c1_35 = arith.constant 1 : index
    %c0_36 = arith.constant 0 : index
    %c0_37 = arith.constant 0 : index
    %61 = vector.load %arg6[%c1_35, %c0_36, %c0_37] : memref<2x1x128xf32, #tpu.memory_space<vmem>>, vector<1x1x128xf32>
    %62 = vector.shape_cast %61 : vector<1x1x128xf32> to vector<1x128xf32>
    %63 = vector.broadcast %60 : vector<8x1xf32> to vector<8x128xf32>
    %64 = vector.broadcast %62 : vector<1x128xf32> to vector<8x128xf32>
    %65 = arith.mulf %63, %64 : vector<8x128xf32>
    %66 = arith.mulf %52, %65 : vector<8x128xf32>
    %c1_38 = arith.constant 1 : index
    %c0_39 = arith.constant 0 : index
    %c0_40 = arith.constant 0 : index
    %67 = vector.load %arg7[%c1_38, %c0_39, %c0_40] : memref<2x1x128xf32, #tpu.memory_space<vmem>>, vector<1x1x128xf32>
    %68 = vector.shape_cast %67 : vector<1x1x128xf32> to vector<1x128xf32>
    %69 = vector.broadcast %68 : vector<1x128xf32> to vector<8x128xf32>
    %70 = arith.addf %66, %69 : vector<8x128xf32>
    %cst_41 = arith.constant 0.000000e+00 : f32
    %71 = vector.broadcast %cst_41 : f32 to vector<8x128xf32>
    %72 = arith.maximumf %70, %71 : vector<8x128xf32>
    %73 = arith.addf %39, %72 : vector<8x128xf32>
    %c0_42 = arith.constant 0 : index
    %c0_43 = arith.constant 0 : index
    %74 = vector.load %arg8[%c0_42, %c0_43] : memref<128x128xf32, #tpu.memory_space<vmem>>, vector<128x128xf32>
    %cst_44 = arith.constant dense<0.000000e+00> : vector<8x128xf32>
    %75 = tpu.matmul %73, %74, %cst_44 {dimension_numbers = #tpu.dot_dimension_numbers<[1], [0], [0], [1], [0, 0, 1, 1], [], []>} : vector<8x128xf32>, vector<128x128xf32>, vector<8x128xf32> -> vector<8x128xf32>
    %c0_45 = arith.constant 0 : index
    %c0_46 = arith.constant 0 : index
    %76 = vector.load %arg9[%c0_45, %c0_46] : memref<1x128xf32, #tpu.memory_space<vmem>>, vector<1x128xf32>
    %77 = vector.broadcast %76 : vector<1x128xf32> to vector<8x128xf32>
    %78 = arith.addf %75, %77 : vector<8x128xf32>
    %c0_47 = arith.constant 0 : index
    %c0_48 = arith.constant 0 : index
    %79 = vector.load %arg10[%c0_47, %c0_48] : memref<8x128xf32, #tpu.memory_space<vmem>>, vector<8x128xf32>
    tpu.vector_store %arg10[%c0_47, %c0_48], %78 {strides = array<i32>} : memref<8x128xf32, #tpu.memory_space<vmem>>, vector<8x128xf32>,
    return
  }
  func.func @transform_0(%arg0: i32) -> (i32, i32) {
    %c0_i32 = arith.constant 0 : i32
    %c0_i32_0 = arith.constant 0 : i32
    return %arg0, %c0_i32 : i32, i32
  }
  func.func @transform_1(%arg0: i32) -> (i32, i32) {
    %c0_i32 = arith.constant 0 : i32
    %c0_i32_0 = arith.constant 0 : i32
    %c0_i32_1 = arith.constant 0 : i32
    return %c0_i32, %c0_i32_0 : i32, i32
  }
  func.func @transform_2(%arg0: i32) -> (i32, i32) {
    %c0_i32 = arith.constant 0 : i32
    %c0_i32_0 = arith.constant 0 : i32
    %c0_i32_1 = arith.constant 0 : i32
    return %c0_i32, %c0_i32_0 : i32, i32
  }
  func.func @transform_3(%arg0: i32) -> (i32, i32, i32) {
    %c0_i32 = arith.constant 0 : i32
    %c0_i32_0 = arith.constant 0 : i32
    %c0_i32_1 = arith.constant 0 : i32
    %c0_i32_2 = arith.constant 0 : i32
    return %c0_i32, %c0_i32_0, %c0_i32_1 : i32, i32, i32
  }
  func.func @transform_4(%arg0: i32) -> (i32, i32, i32) {
    %c0_i32 = arith.constant 0 : i32
    %c0_i32_0 = arith.constant 0 : i32
    %c0_i32_1 = arith.constant 0 : i32
    %c0_i32_2 = arith.constant 0 : i32
    return %c0_i32, %c0_i32_0, %c0_i32_1 : i32, i32, i32
  }
  func.func @transform_5(%arg0: i32) -> (i32, i32, i32) {
    %c0_i32 = arith.constant 0 : i32
    %c0_i32_0 = arith.constant 0 : i32
    %c0_i32_1 = arith.constant 0 : i32
    %c0_i32_2 = arith.constant 0 : i32
    return %c0_i32, %c0_i32_0, %c0_i32_1 : i32, i32, i32
  }
  func.func @transform_6(%arg0: i32) -> (i32, i32, i32) {
    %c0_i32 = arith.constant 0 : i32
    %c0_i32_0 = arith.constant 0 : i32
    %c0_i32_1 = arith.constant 0 : i32
    %c0_i32_2 = arith.constant 0 : i32
    return %c0_i32, %c0_i32_0, %c0_i32_1 : i32, i32, i32
  }
  func.func @transform_7(%arg0: i32) -> (i32, i32) {
    %c0_i32 = arith.constant 0 : i32
    %c0_i32_0 = arith.constant 0 : i32
    %c0_i32_1 = arith.constant 0 : i32
    return %c0_i32, %c0_i32_0 : i32, i32
  }
  func.func @transform_8(%arg0: i32) -> (i32, i32) {
    %c0_i32 = arith.constant 0 : i32
    %c0_i32_0 = arith.constant 0 : i32
    %c0_i32_1 = arith.constant 0 : i32
    return %c0_i32, %c0_i32_0 : i32, i32
  }
  func.func @transform_9(%arg0: i32) -> (i32, i32) {
    %c0_i32 = arith.constant 0 : i32
    %c0_i32_0 = arith.constant 0 : i32
    return %arg0, %c0_i32 : i32, i32
  }
}

</mosaic_0001>

<llo_original>
// kernel: residual_mlp.1
$region0: #{residual_mlp.1}
  #allocation0 [shape = 'u32[]', space=smem, size = 0x4, offset = 0x4, fixed_abs, tag = 'smem constant byte address 0x4 - core index']
  #allocation1 [shape = 'u32[72,128]{1,0:T(1,128)}', space=vmem, size = 0x9000, scoped, tag = 'internal scratch']
  %s0 = inlined_call_operand.hbm [shape: f32[16,32], index: 0, kind: input, shape index: {}]
  %s1 = inlined_call_operand.hbm [shape: f32[32,128], index: 1, kind: input, shape index: {}]
  %s2 = inlined_call_operand.hbm [shape: f32[1,128], index: 2, kind: input, shape index: {}]
  %s3 = inlined_call_operand.hbm [shape: f32[2,128,128], index: 3, kind: input, shape index: {}]
  %s4 = inlined_call_operand.vmem [shape: f32[2,1,128], index: 4, kind: input, shape index: {}]
  %s5 = inlined_call_operand.vmem [shape: f32[2,1,128], index: 5, kind: input, shape index: {}]
  %s6 = inlined_call_operand.vmem [shape: f32[2,1,128], index: 6, kind: input, shape index: {}]
  %s7 = inlined_call_operand.hbm [shape: f32[128,128], index: 7, kind: input, shape index: {}]
  %s8 = inlined_call_operand.vmem [shape: f32[1,128], index: 8, kind: input, shape index: {}]
  %s9 = inlined_call_operand.vmem [shape: f32[16,128], index: 9, kind: output, shape index: {}]
  %s10 = sld [smem:[#allocation0]]
  $region89: #{residual_mlp.1} parent=0
    _
  %s12 = ssub.s32 1, %s10
  %s13 = scalar_select 0, %s12, %s10
  $region1: #{residual_mlp.1} parent=0
    #allocation2 [shape = 'u8[8192]{0}', space=vmem, size = 0x2000, scoped, tag = 'input window, operand 0']
    #allocation3 [shape = 's32[2]{0}', space=sflag, size = 0x8, scoped, tag = 'scoped memory for residual_mlp.1']
    #allocation4 [shape = 'u8[16384]{0}', space=vmem, size = 0x4000, scoped, tag = 'input window, operand 1, single buffered']
    #allocation5 [shape = 's32[1]{0}', space=sflag, size = 0x4, scoped, tag = 'scoped memory for residual_mlp.1']
    #allocation6 [shape = 'u8[512]{0}', space=vmem, size = 0x400, scoped, tag = 'input window, operand 2, single buffered']
    #allocation7 [shape = 'u8[131072]{0}', space=vmem, size = 0x20000, scoped, tag = 'input window, operand 3, single buffered']
    #allocation8 [shape = 's32[1]{0}', space=sflag, size = 0x4, scoped, tag = 'scoped memory for residual_mlp.1']
    #allocation9 [shape = 'u8[65536]{0}', space=vmem, size = 0x10000, scoped, tag = 'input window, operand 7, single buffered']
    %14 = vsyncpa [#allocation3], 0
    %s15 = scalar_lea.sflag [#allocation3], 1
    %16 = vsyncpa %s15, 0
    %17 = vsyncpa [#allocation5], 0
    %18 = vsyncpa [#allocation8], 0
    loop: start=0, step=1, limit=4
    $region2: #{residual_mlp.1} parent=1 // loop_pre_header
      _
    $region3: #{residual_mlp.1} parent=1 // loop_header
      %s20 = sphi 0, %s24
      %p21 = scmp.ge.s32.totalorder %s20, 4
      %s30 = sphi 0, %s32
      %s33 = sphi 0, %s30
      %s34 = sphi 0, %s33
      %s50 = sphi 0, %s34
      %s54 = sphi 0, %s54
      %s56 = sphi 0, %s54
      %s57 = sphi 0, %s56
      %s71 = sphi 0, %s57
      %s75 = sphi 0, %s75
      %s77 = sphi 0, %s75
      %s78 = sphi 0, %s77
      %s92 = sphi 0, %s78
      %s96 = sphi 0, %s96
      %s98 = sphi 0, %s96
      %s99 = sphi 0, %s98
      %s113 = sphi 0, %s99
      %s117 = sphi 0, %s117
      %s119 = sphi 0, %s117
      %s120 = sphi 0, %s119
      %s134 = sphi 0, %s120
      %s138 = sphi 0, %s138
      %s140 = sphi 0, %s138
      %s141 = sphi 0, %s140
      %s155 = sphi 0, %s141
      %s159 = sphi 0, %s159
      %s161 = sphi 0, %s159
      %s162 = sphi 0, %s161
      %s176 = sphi 0, %s162
      %s180 = sphi 0, %s180
      %s182 = sphi 0, %s180
      %s183 = sphi 0, %s182
      %s197 = sphi 0, %s183
      %s201 = sphi 0, %s201
      %s203 = sphi 0, %s201
      %s204 = sphi 0, %s203
      %s218 = sphi 0, %s204
      %s224 = sphi 0, %s226
      %s227 = sphi 0, %s224
      %s228 = sphi 0, %s227
      %s244 = sphi 0, %s228
    $region4: #{residual_mlp.1} parent=1 // loop_header_branch
      %23 = sbr.rel (%p21) target = $region8
    $region5: #{residual_mlp.1} parent=1 // loop_body
      %s25 = ssub.s32 %s20, 1
      %s26 = ssub.s32 %s20, 2
      %s27 = sadd.s32 %s20, 1
      %s28 = ssub.s32 %s20, %s27
      %p29 = scmp.eq.s32.totalorder %s28, 0
      %s31 = sadd.s32 %s30, 1
      %s32 = scalar_select %p29, %s30, %s31
      %p35 = pneg %p29
      %p36 = scmp.eq.s32.totalorder %s20, 1
      %p37 = por %p35, %p36
      %p38 = scmp.ne.s32.totalorder %s30, %s33
      %p39 = scmp.eq.s32.totalorder %s20, 0
      %p40 = por %p38, %p39
      %p41 = scmp.ne.s32.totalorder %s30, %s33
      %p42 = scmp.eq.s32.totalorder %s25, 1
      %p43 = por %p41, %p42
      %p44 = scmp.ne.s32.totalorder %s33, %s34
      %p45 = scmp.eq.s32.totalorder %s25, 0
      %p46 = por %p44, %p45
      %p47 = scmp.ne.s32.totalorder %s33, %s34
      %p48 = scmp.eq.s32.totalorder %s26, 1
      %p49 = por %p47, %p48
      %p51 = scmp.ne.s32.totalorder %s34, %s50
      %p52 = scmp.eq.s32.totalorder %s26, 0
      %p53 = por %p51, %p52
      %s55 = sadd.s32 %s54, 1
      %p58 = scmp.eq.s32.totalorder %s20, 1
      %p59 = scmp.ne.s32.totalorder %s54, %s56
      %p60 = scmp.eq.s32.totalorder %s20, 0
      %p61 = por %p59, %p60
      %p62 = scmp.ne.s32.totalorder %s54, %s56
      %p63 = scmp.eq.s32.totalorder %s25, 1
      %p64 = por %p62, %p63
      %p65 = scmp.ne.s32.totalorder %s56, %s57
      %p66 = scmp.eq.s32.totalorder %s25, 0
      %p67 = por %p65, %p66
      %p68 = scmp.ne.s32.totalorder %s56, %s57
      %p69 = scmp.eq.s32.totalorder %s26, 1
      %p70 = por %p68, %p69
      %p72 = scmp.ne.s32.totalorder %s57, %s71
      %p73 = scmp.eq.s32.totalorder %s26, 0
      %p74 = por %p72, %p73
      %s76 = sadd.s32 %s75, 1
      %p79 = scmp.eq.s32.totalorder %s20, 1
      %p80 = scmp.ne.s32.totalorder %s75, %s77
      %p81 = scmp.eq.s32.totalorder %s20, 0
      %p82 = por %p80, %p81
      %p83 = scmp.ne.s32.totalorder %s75, %s77
      %p84 = scmp.eq.s32.totalorder %s25, 1
      %p85 = por %p83, %p84
      %p86 = scmp.ne.s32.totalorder %s77, %s78
      %p87 = scmp.eq.s32.totalorder %s25, 0
      %p88 = por %p86, %p87
      %p89 = scmp.ne.s32.totalorder %s77, %s78
      %p90 = scmp.eq.s32.totalorder %s26, 1
      %p91 = por %p89, %p90
      %p93 = scmp.ne.s32.totalorder %s78, %s92
      %p94 = scmp.eq.s32.totalorder %s26, 0
      %p95 = por %p93, %p94
      %s97 = sadd.s32 %s96, 1
      %p100 = scmp.eq.s32.totalorder %s20, 1
      %p101 = scmp.ne.s32.totalorder %s96, %s98
      %p102 = scmp.eq.s32.totalorder %s20, 0
      %p103 = por %p101, %p102
      %p104 = scmp.ne.s32.totalorder %s96, %s98
      %p105 = scmp.eq.s32.totalorder %s25, 1
      %p106 = por %p104, %p105
      %p107 = scmp.ne.s32.totalorder %s98, %s99
      %p108 = scmp.eq.s32.totalorder %s25, 0
      %p109 = por %p107, %p108
      %p110 = scmp.ne.s32.totalorder %s98, %s99
      %p111 = scmp.eq.s32.totalorder %s26, 1
      %p112 = por %p110, %p111
      %p114 = scmp.ne.s32.totalorder %s99, %s113
      %p115 = scmp.eq.s32.totalorder %s26, 0
      %p116 = por %p114, %p115
      %s118 = sadd.s32 %s117, 1
      %p121 = scmp.eq.s32.totalorder %s20, 1
      %p122 = scmp.ne.s32.totalorder %s117, %s119
      %p123 = scmp.eq.s32.totalorder %s20, 0
      %p124 = por %p122, %p123
      %p125 = scmp.ne.s32.totalorder %s117, %s119
      %p126 = scmp.eq.s32.totalorder %s25, 1
      %p127 = por %p125, %p126
      %p128 = scmp.ne.s32.totalorder %s119, %s120
      %p129 = scmp.eq.s32.totalorder %s25, 0
      %p130 = por %p128, %p129
      %p131 = scmp.ne.s32.totalorder %s119, %s120
      %p132 = scmp.eq.s32.totalorder %s26, 1
      %p133 = por %p131, %p132
      %p135 = scmp.ne.s32.totalorder %s120, %s134
      %p136 = scmp.eq.s32.totalorder %s26, 0
      %p137 = por %p135, %p136
      %s139 = sadd.s32 %s138, 1
      %p142 = scmp.eq.s32.totalorder %s20, 1
      %p143 = scmp.ne.s32.totalorder %s138, %s140
      %p144 = scmp.eq.s32.totalorder %s20, 0
      %p145 = por %p143, %p144
      %p146 = scmp.ne.s32.totalorder %s138, %s140
      %p147 = scmp.eq.s32.totalorder %s25, 1
      %p148 = por %p146, %p147
      %p149 = scmp.ne.s32.totalorder %s140, %s141
      %p150 = scmp.eq.s32.totalorder %s25, 0
      %p151 = por %p149, %p150
      %p152 = scmp.ne.s32.totalorder %s140, %s141
      %p153 = scmp.eq.s32.totalorder %s26, 1
      %p154 = por %p152, %p153
      %p156 = scmp.ne.s32.totalorder %s141, %s155
      %p157 = scmp.eq.s32.totalorder %s26, 0
      %p158 = por %p156, %p157
      %s160 = sadd.s32 %s159, 1
      %p163 = scmp.eq.s32.totalorder %s20, 1
      %p164 = scmp.ne.s32.totalorder %s159, %s161
      %p165 = scmp.eq.s32.totalorder %s20, 0
      %p166 = por %p164, %p165
      %p167 = scmp.ne.s32.totalorder %s159, %s161
      %p168 = scmp.eq.s32.totalorder %s25, 1
      %p169 = por %p167, %p168
      %p170 = scmp.ne.s32.totalorder %s161, %s162
      %p171 = scmp.eq.s32.totalorder %s25, 0
      %p172 = por %p170, %p171
      %p173 = scmp.ne.s32.totalorder %s161, %s162
      %p174 = scmp.eq.s32.totalorder %s26, 1
      %p175 = por %p173, %p174
      %p177 = scmp.ne.s32.totalorder %s162, %s176
      %p178 = scmp.eq.s32.totalorder %s26, 0
      %p179 = por %p177, %p178
      %s181 = sadd.s32 %s180, 1
      %p184 = scmp.eq.s32.totalorder %s20, 1
      %p185 = scmp.ne.s32.totalorder %s180, %s182
      %p186 = scmp.eq.s32.totalorder %s20, 0
      %p187 = por %p185, %p186
      %p188 = scmp.ne.s32.totalorder %s180, %s182
      %p189 = scmp.eq.s32.totalorder %s25, 1
      %p190 = por %p188, %p189
      %p191 = scmp.ne.s32.totalorder %s182, %s183
      %p192 = scmp.eq.s32.totalorder %s25, 0
      %p193 = por %p191, %p192
      %p194 = scmp.ne.s32.totalorder %s182, %s183
      %p195 = scmp.eq.s32.totalorder %s26, 1
      %p196 = por %p194, %p195
      %p198 = scmp.ne.s32.totalorder %s183, %s197
      %p199 = scmp.eq.s32.totalorder %s26, 0
      %p200 = por %p198, %p199
      %s202 = sadd.s32 %s201, 1
      %p205 = scmp.eq.s32.totalorder %s20, 1
      %p206 = scmp.ne.s32.totalorder %s201, %s203
      %p207 = scmp.eq.s32.totalorder %s20, 0
      %p208 = por %p206, %p207
      %p209 = scmp.ne.s32.totalorder %s201, %s203
      %p210 = scmp.eq.s32.totalorder %s25, 1
      %p211 = por %p209, %p210
      %p212 = scmp.ne.s32.totalorder %s203, %s204
      %p213 = scmp.eq.s32.totalorder %s25, 0
      %p214 = por %p212, %p213
      %p215 = scmp.ne.s32.totalorder %s203, %s204
      %p216 = scmp.eq.s32.totalorder %s26, 1
      %p217 = por %p215, %p216
      %p219 = scmp.ne.s32.totalorder %s204, %s218
      %p220 = scmp.eq.s32.totalorder %s26, 0
      %p221 = por %p219, %p220
      %s222 = ssub.s32 %s20, %s27
      %p223 = scmp.eq.s32.totalorder %s222, 0
      %s225 = sadd.s32 %s224, 1
      %s226 = scalar_select %p223, %s224, %s225
      %p229 = pneg %p223
      %p230 = scmp.eq.s32.totalorder %s20, 1
      %p231 = por %p229, %p230
      %p232 = scmp.ne.s32.totalorder %s224, %s227
      %p233 = scmp.eq.s32.totalorder %s20, 0
      %p234 = por %p232, %p233
      %p235 = scmp.ne.s32.totalorder %s224, %s227
      %p236 = scmp.eq.s32.totalorder %s25, 1
      %p237 = por %p235, %p236
      %p238 = scmp.ne.s32.totalorder %s227, %s228
      %p239 = scmp.eq.s32.totalorder %s25, 0
      %p240 = por %p238, %p239
      %p241 = scmp.ne.s32.totalorder %s227, %s228
      %p242 = scmp.eq.s32.totalorder %s26, 1
      %p243 = por %p241, %p242
      %p245 = scmp.ne.s32.totalorder %s228, %s244
      %p246 = scmp.eq.s32.totalorder %s26, 0
      %p247 = por %p245, %p246
      %p248 = scmp.le.s32.totalorder 1, %s20
      %p249 = scmp.lt.s32.totalorder %s20, 3
      %p250 = pnand %p248, %p249
      %p251 = pneg %p250
      // Predicated region
      $region9: #{residual_mlp.1} parent=5 // pred_check
        _
      $region10: #{residual_mlp.1} parent=5 // pred_check_branch
        %253 = sbr.rel (%p250) target = $region12
      $region11: #{residual_mlp.1} parent=5 // pred_region
        %s254 = ssub.s32 %s20, 1
        // Predicated region
        $region13: #{residual_mlp.1} parent=11 // pred_check
          %p255 = pneg %p67
        $region14: #{residual_mlp.1} parent=11 // pred_check_branch
          %257 = sbr.rel (%p255) target = $region16
        $region15: #{residual_mlp.1} parent=11 // pred_region
          %259 = vsyncadd [#allocation5], 0
          %s260 = sshll.u32 %s1, 4
          %s261 = int_to_ptr.hbm [resolvable:$true] %s260
          %s262 = sshll.u32 [#allocation4], 4
          %s263 = int_to_ptr.vmem [resolvable:$true] %s262
          %268 = dma.hbm_to_vmem [thread:$0]  %s261, 512, %s263, [#allocation5], 128, 128, 8
        $region16: #{residual_mlp.1} parent=11 // pred_fallthru
          _
        // Predicated region
        $region17: #{residual_mlp.1} parent=11 // pred_check
          %p269 = pneg %p88
        $region18: #{residual_mlp.1} parent=11 // pred_check_branch
          %271 = sbr.rel (%p269) target = $region20
        $region19: #{residual_mlp.1} parent=11 // pred_region
          %273 = vsyncadd [#allocation5], 0
          %s275 = sshll.u32 %s2, 4
          %s276 = int_to_ptr.hbm [resolvable:$true] %s275
          %s277 = sshll.u32 [#allocation6], 4
          %s278 = int_to_ptr.vmem [resolvable:$true] %s277
          %280 = dma.hbm_to_vmem [thread:$0]  %s276, 16, %s278, [#allocation5]
        $region20: #{residual_mlp.1} parent=11 // pred_fallthru
          _
        // Predicated region
        $region21: #{residual_mlp.1} parent=11 // pred_check
          %p281 = pneg %p109
        $region22: #{residual_mlp.1} parent=11 // pred_check_branch
          %283 = sbr.rel (%p281) target = $region24
        $region23: #{residual_mlp.1} parent=11 // pred_region
          %285 = vsyncadd [#allocation8], 0
          %s286 = sshll.u32 %s3, 4
          %s287 = int_to_ptr.hbm [resolvable:$true] %s286
          %s288 = sshll.u32 [#allocation7], 4
          %s289 = int_to_ptr.vmem [resolvable:$true] %s288
          %294 = dma.hbm_to_vmem [thread:$0]  %s287, 4096, %s289, [#allocation8], 128, 128, 8
        $region24: #{residual_mlp.1} parent=11 // pred_fallthru
          _
        // Predicated region
        $region25: #{residual_mlp.1} parent=11 // pred_check
          %p295 = pneg %p130
        $region26: #{residual_mlp.1} parent=11 // pred_check_branch
          %297 = sbr.rel (%p295) target = $region28
        $region27: #{residual_mlp.1} parent=11 // pred_region
          _
        $region28: #{residual_mlp.1} parent=11 // pred_fallthru
          _
        // Predicated region
        $region29: #{residual_mlp.1} parent=11 // pred_check
          %p298 = pneg %p151
        $region30: #{residual_mlp.1} parent=11 // pred_check_branch
          %300 = sbr.rel (%p298) target = $region32
        $region31: #{residual_mlp.1} parent=11 // pred_region
          _
        $region32: #{residual_mlp.1} parent=11 // pred_fallthru
          _
        // Predicated region
        $region33: #{residual_mlp.1} parent=11 // pred_check
          %p301 = pneg %p172
        $region34: #{residual_mlp.1} parent=11 // pred_check_branch
          %303 = sbr.rel (%p301) target = $region36
        $region35: #{residual_mlp.1} parent=11 // pred_region
          _
        $region36: #{residual_mlp.1} parent=11 // pred_fallthru
          _
        // Predicated region
        $region37: #{residual_mlp.1} parent=11 // pred_check
          %p304 = pneg %p193
        $region38: #{residual_mlp.1} parent=11 // pred_check_branch
          %306 = sbr.rel (%p304) target = $region40
        $region39: #{residual_mlp.1} parent=11 // pred_region
          %308 = vsyncadd [#allocation8], 0
          %s309 = sshll.u32 %s7, 4
          %s310 = int_to_ptr.hbm [resolvable:$true] %s309
          %s311 = sshll.u32 [#allocation9], 4
          %s312 = int_to_ptr.vmem [resolvable:$true] %s311
          %317 = dma.hbm_to_vmem [thread:$0]  %s310, 2048, %s312, [#allocation8], 128, 128, 8
        $region40: #{residual_mlp.1} parent=11 // pred_fallthru
          _
        // Predicated region
        $region41: #{residual_mlp.1} parent=11 // pred_check
          %p318 = pneg %p214
        $region42: #{residual_mlp.1} parent=11 // pred_check_branch
          %320 = sbr.rel (%p318) target = $region44
        $region43: #{residual_mlp.1} parent=11 // pred_region
          _
        $region44: #{residual_mlp.1} parent=11 // pred_fallthru
          _
      $region12: #{residual_mlp.1} parent=5 // pred_fallthru
        _
      %p321 = scmp.lt.s32.totalorder %s20, 2
      // Predicated region
      $region45: #{residual_mlp.1} parent=5 // pred_check
        %p322 = pneg %p321
      $region46: #{residual_mlp.1} parent=5 // pred_check_branch
        %324 = sbr.rel (%p322) target = $region48
      $region47: #{residual_mlp.1} parent=5 // pred_region
        // Predicated region
        $region49: #{residual_mlp.1} parent=47 // pred_check
          %p325 = pneg %p40
        $region50: #{residual_mlp.1} parent=47 // pred_check_branch
          %327 = sbr.rel (%p325) target = $region52
        $region51: #{residual_mlp.1} parent=47 // pred_region
          %s328 = sand.u32 %s30, 1
          %s329 = scalar_lea.sflag [#allocation3], %s328
          %s330 = sand.u32 %s30, 1
          %s331 = smul.addr %s330, 8
          %s332 = scalar_lea.vmem [#allocation2], %s331
          %334 = vsyncadd %s329, 0
          %s335 = smul.addr %s20, 8
          %s336 = scalar_lea.hbm %s0, %s335
          %s338 = sshll.u32 %s336, 4
          %s339 = int_to_ptr.hbm [resolvable:$true] %s338
          %s340 = sshll.u32 %s332, 4
          %s341 = int_to_ptr.vmem [resolvable:$true] %s340
          %343 = dma.hbm_to_vmem [thread:$0]  %s339, 128, %s341, %s329
        $region52: #{residual_mlp.1} parent=47 // pred_fallthru
          _
      $region48: #{residual_mlp.1} parent=5 // pred_fallthru
        _
      %p344 = scmp.le.s32.totalorder 1, %s20
      %p345 = scmp.lt.s32.totalorder %s20, 3
      %p346 = pnand %p344, %p345
      %p347 = pneg %p346
      // Predicated region
      $region53: #{residual_mlp.1} parent=5 // pred_check
        _
      $region54: #{residual_mlp.1} parent=5 // pred_check_branch
        %349 = sbr.rel (%p346) target = $region56
      $region55: #{residual_mlp.1} parent=5 // pred_region
        %s350 = ssub.s32 %s20, 1
        %s351 = sand.u32 %s33, 1
        %s352 = scalar_lea.sflag [#allocation3], %s351
        %s353 = sand.u32 %s33, 1
        %s354 = smul.addr %s353, 8
        %s355 = scalar_lea.vmem [#allocation2], %s354
        // Predicated region
        $region57: #{residual_mlp.1} parent=55 // pred_check
          %p356 = pneg %p46
        $region58: #{residual_mlp.1} parent=55 // pred_check_branch
          %358 = sbr.rel (%p356) target = $region60
        $region59: #{residual_mlp.1} parent=55 // pred_region
          %360 = dma.done %s352, 128
        $region60: #{residual_mlp.1} parent=55 // pred_fallthru
          _
        // Predicated region
        $region61: #{residual_mlp.1} parent=55 // pred_check
          %p361 = pneg %p67
        $region62: #{residual_mlp.1} parent=55 // pred_check_branch
          %363 = sbr.rel (%p361) target = $region64
        $region63: #{residual_mlp.1} parent=55 // pred_region
          %365 = dma.done [#allocation5], 512
        $region64: #{residual_mlp.1} parent=55 // pred_fallthru
          _
        // Predicated region
        $region65: #{residual_mlp.1} parent=55 // pred_check
          %p366 = pneg %p88
        $region66: #{residual_mlp.1} parent=55 // pred_check_branch
          %368 = sbr.rel (%p366) target = $region68
        $region67: #{residual_mlp.1} parent=55 // pred_region
          %370 = dma.done [#allocation5], 16
        $region68: #{residual_mlp.1} parent=55 // pred_fallthru
          _
        // Predicated region
        $region69: #{residual_mlp.1} parent=55 // pred_check
          %p371 = pneg %p109
        $region70: #{residual_mlp.1} parent=55 // pred_check_branch
          %373 = sbr.rel (%p371) target = $region72
        $region71: #{residual_mlp.1} parent=55 // pred_region
          %375 = dma.done [#allocation8], 4096
        $region72: #{residual_mlp.1} parent=55 // pred_fallthru
          _
        // Predicated region
        $region73: #{residual_mlp.1} parent=55 // pred_check
          %p376 = pneg %p193
        $region74: #{residual_mlp.1} parent=55 // pred_check_branch
          %378 = sbr.rel (%p376) target = $region76
        $region75: #{residual_mlp.1} parent=55 // pred_region
          %380 = dma.done [#allocation8], 2048
        $region76: #{residual_mlp.1} parent=55 // pred_fallthru
          _
        %s381 = sand.u32 %s33, 1
        %s382 = scalar_lea.sflag [#allocation3], %s381
        %s383 = sand.u32 %s33, 1
        %s384 = smul.addr %s383, 8
        %s385 = scalar_lea.vmem [#allocation2], %s384
        %p386 = pneg %p46
        %p387 = pneg %p43
        %p388 = pneg %p67
        %p389 = pneg %p64
        %p390 = pneg %p88
        %p391 = pneg %p85
        %p392 = pneg %p109
        %p393 = pneg %p106
        %p394 = pneg %p130
        %p395 = pneg %p127
        %p396 = pneg %p151
        %p397 = pneg %p148
        %p398 = pneg %p172
        %p399 = pneg %p169
        %p400 = pneg %p193
        %p401 = pneg %p190
        %p402 = pneg %p214
        %p403 = pneg %p211
        %p404 = pneg %p240
        %p405 = pneg %p237
        %p406 = scmp.lt.s32.totalorder %s25, 1
        %s407 = scalar_select %p406, %s25, 1
        %s408 = smul.addr %s407, 8
        %s409 = scalar_lea.vmem %s9, %s408
        %p410 = scmp.lt.s32.totalorder %s25, 1
        %s411 = scalar_select %p410, %s25, 1
        %s412 = smul.addr %s411, 8
        %s413 = scalar_lea.vmem %s9, %s412
        %v414 = vld [vmem:[%s355] sm:$0xff]
        %v415 = vld [vmem:[#allocation4] sm:$0xff]
        %v416 = vld [vmem:[#allocation4 + $0x8] sm:$0xff]
        %v417 = vld [vmem:[#allocation4 + $0x10] sm:$0xff]
        %v418 = vld [vmem:[#allocation4 + $0x18] sm:$0xff]
        %v419 = vld [vmem:[#allocation6] sm:$0x1]
        %v421 = vperm.slane %v419, 0
        %vm423 = vcmask 261120
        %v425 = vsel %vm423, %v414, 0
        %427 = vmatpush.msra.mxu0 0.0
        %428 = vmatpush.msra.mxu0 0.0
        %429 = vmatpush.msra.mxu0 0.0
        %430 = vmatpush.msra.mxu0 0.0
        %431 = vmatpush.msra.mxu0 0.0
        %432 = vmatpush.msra.mxu0 0.0
        %433 = vmatpush.msra.mxu0 0.0
        %434 = vmatpush.msra.mxu0 0.0
        %435 = vmatpush.msra.mxu0 0.0
        %436 = vmatpush.msra.mxu0 0.0
        %437 = vmatpush.msra.mxu0 0.0
        %438 = vmatpush.msra.mxu0 0.0
        %439 = vmatpush.msra.mxu0 %v418
        %440 = vmatpush.msra.mxu0 %v417
        %441 = vmatpush.msra.mxu0 %v416
        %442 = vmatpush.msra.mxu0 %v415
        %443 = vmatmul.f32.gmra.mxu0 %v425
        %v444 = vpop.f32.mrf.mxu0
        %v445 = vadd.f32 %v421, %v444
        %446 = vdwg.mxu0
        %v447 = vld [vmem:[#allocation7] sm:$0xff]
        %v448 = vld [vmem:[#allocation7 + $0x8] sm:$0xff]
        %v449 = vld [vmem:[#allocation7 + $0x10] sm:$0xff]
        %v450 = vld [vmem:[#allocation7 + $0x18] sm:$0xff]
        %v451 = vld [vmem:[#allocation7 + $0x20] sm:$0xff]
        %v452 = vld [vmem:[#allocation7 + $0x28] sm:$0xff]
        %v453 = vld [vmem:[#allocation7 + $0x30] sm:$0xff]
        %v454 = vld [vmem:[#allocation7 + $0x38] sm:$0xff]
        %v455 = vld [vmem:[#allocation7 + $0x40] sm:$0xff]
        %v456 = vld [vmem:[#allocation7 + $0x48] sm:$0xff]
        %v457 = vld [vmem:[#allocation7 + $0x50] sm:$0xff]
        %v458 = vld [vmem:[#allocation7 + $0x58] sm:$0xff]
        %v459 = vld [vmem:[#allocation7 + $0x60] sm:$0xff]
        %v460 = vld [vmem:[#allocation7 + $0x68] sm:$0xff]
        %v461 = vld [vmem:[#allocation7 + $0x70] sm:$0xff]
        %v462 = vld [vmem:[#allocation7 + $0x78] sm:$0xff]
        %v463 = vld [vmem:[%s4] sm:$0x1]
        %v465 = vperm.slane %v463, 0
        %467 = vmatpush.msra.mxu0 %v462
        %468 = vmatpush.msra.mxu0 %v461
        %469 = vmatpush.msra.mxu0 %v460
        %470 = vmatpush.msra.mxu0 %v459
        %471 = vmatpush.msra.mxu0 %v458
        %472 = vmatpush.msra.mxu0 %v457
        %473 = vmatpush.msra.mxu0 %v456
        %474 = vmatpush.msra.mxu0 %v455
        %475 = vmatpush.msra.mxu0 %v454
        %476 = vmatpush.msra.mxu0 %v453
        %477 = vmatpush.msra.mxu0 %v452
        %478 = vmatpush.msra.mxu0 %v451
        %479 = vmatpush.msra.mxu0 %v450
        %480 = vmatpush.msra.mxu0 %v449
        %481 = vmatpush.msra.mxu0 %v448
        %482 = vmatpush.msra.mxu0 %v447
        %483 = vmatmul.f32.gmra.mxu0 %v445
        %v484 = vpop.f32.mrf.mxu0
        %v485 = vadd.f32 %v465, %v484
        %486 = vdwg.mxu0
        %487 = vadd.xlane.f32.xlu0 %v485
        %v488 = vpop.xlane.xlu0 %487
        %v489 = vmul.f32 %v488, 0.0078125
        %v490 = vsub.f32 %v485, %v489
        %v491 = vmul.f32 %v490, %v490
        %492 = vadd.xlane.f32.xlu0 %v491
        %v493 = vpop.xlane.xlu0 %492
        %v494 = vmul.f32 %v493, 0.0078125
        %v495 = vadd.f32 %v494, 1e-05
        %v496 = vrsqrt.pop %v495
        %v497 = vmul.f32 %v496, %v495
        %v498 = vmul.f32 %v497, %v496
        %v499 = vmul.f32 0.5, %v498
        %v500 = vsub.f32 1.5, %v499
        %v501 = vmul.f32 %v496, %v500
        %vm502 = vweird.f32 %v495
        %vm503 = vweird.f32 %v496
        %vm504 = vmor %vm502, %vm503
        %v505 = vsel %vm504, %v496, %v501
        %v506 = vld [vmem:[%s5] sm:$0x1]
        %v508 = vperm.slane %v506, 0
        %v510 = vmul.f32 %v505, %v508
        %v511 = vmul.f32 %v490, %v510
        %v512 = vld [vmem:[%s6] sm:$0x1]
        %v514 = vperm.slane %v512, 0
        %v516 = vadd.f32 %v511, %v514
        %v517 = vmax.f32 %v516, 0.0
        %v518 = vadd.f32 %v445, %v517
        %s519 = scalar_lea.vmem [#allocation7], 128
        %v520 = vld [vmem:[%s519] sm:$0xff]
        %v521 = vld [vmem:[%s519 + $0x8] sm:$0xff]
        %v522 = vld [vmem:[%s519 + $0x10] sm:$0xff]
        %v523 = vld [vmem:[%s519 + $0x18] sm:$0xff]
        %v524 = vld [vmem:[%s519 + $0x20] sm:$0xff]
        %v525 = vld [vmem:[%s519 + $0x28] sm:$0xff]
        %v526 = vld [vmem:[%s519 + $0x30] sm:$0xff]
        %v527 = vld [vmem:[%s519 + $0x38] sm:$0xff]
        %v528 = vld [vmem:[%s519 + $0x40] sm:$0xff]
        %v529 = vld [vmem:[%s519 + $0x48] sm:$0xff]
        %v530 = vld [vmem:[%s519 + $0x50] sm:$0xff]
        %v531 = vld [vmem:[%s519 + $0x58] sm:$0xff]
        %v532 = vld [vmem:[%s519 + $0x60] sm:$0xff]
        %v533 = vld [vmem:[%s519 + $0x68] sm:$0xff]
        %v534 = vld [vmem:[%s519 + $0x70] sm:$0xff]
        %v535 = vld [vmem:[%s519 + $0x78] sm:$0xff]
        %s536 = scalar_lea.vmem %s4, 1
        %v537 = vld [vmem:[%s536] sm:$0x1]
        %v539 = vperm.slane %v537, 0
        %541 = vmatpush.msra.mxu0 %v535
        %542 = vmatpush.msra.mxu0 %v534
        %543 = vmatpush.msra.mxu0 %v533
        %544 = vmatpush.msra.mxu0 %v532
        %545 = vmatpush.msra.mxu0 %v531
        %546 = vmatpush.msra.mxu0 %v530
        %547 = vmatpush.msra.mxu0 %v529
        %548 = vmatpush.msra.mxu0 %v528
        %549 = vmatpush.msra.mxu0 %v527
        %550 = vmatpush.msra.mxu0 %v526
        %551 = vmatpush.msra.mxu0 %v525
        %552 = vmatpush.msra.mxu0 %v524
        %553 = vmatpush.msra.mxu0 %v523
        %554 = vmatpush.msra.mxu0 %v522
        %555 = vmatpush.msra.mxu0 %v521
        %556 = vmatpush.msra.mxu0 %v520
        %557 = vmatmul.f32.gmra.mxu0 %v518
        %v558 = vpop.f32.mrf.mxu0
        %v559 = vadd.f32 %v539, %v558
        %560 = vdwg.mxu0
        %561 = vadd.xlane.f32.xlu0 %v559
        %v562 = vpop.xlane.xlu0 %561
        %v563 = vmul.f32 %v562, 0.0078125
        %v564 = vsub.f32 %v559, %v563
        %v565 = vmul.f32 %v564, %v564
        %566 = vadd.xlane.f32.xlu0 %v565
        %v567 = vpop.xlane.xlu0 %566
        %v568 = vmul.f32 %v567, 0.0078125
        %v569 = vadd.f32 %v568, 1e-05
        %v570 = vrsqrt.pop %v569
        %v571 = vmul.f32 %v570, %v569
        %v572 = vmul.f32 %v571, %v570
        %v573 = vmul.f32 0.5, %v572
        %v574 = vsub.f32 1.5, %v573
        %v575 = vmul.f32 %v570, %v574
        %vm576 = vweird.f32 %v569
        %vm577 = vweird.f32 %v570
        %vm578 = vmor %vm576, %vm577
        %v579 = vsel %vm578, %v570, %v575
        %s580 = scalar_lea.vmem %s5, 1
        %v581 = vld [vmem:[%s580] sm:$0x1]
        %v583 = vperm.slane %v581, 0
        %v585 = vmul.f32 %v579, %v583
        %v586 = vmul.f32 %v564, %v585
        %s587 = scalar_lea.vmem %s6, 1
        %v588 = vld [vmem:[%s587] sm:$0x1]
        %v590 = vperm.slane %v588, 0
        %v592 = vadd.f32 %v586, %v590
        %v593 = vmax.f32 %v592, 0.0
        %v594 = vadd.f32 %v518, %v593
        %v595 = vld [vmem:[#allocation9] sm:$0xff]
        %v596 = vld [vmem:[#allocation9 + $0x8] sm:$0xff]
        %v597 = vld [vmem:[#allocation9 + $0x10] sm:$0xff]
        %v598 = vld [vmem:[#allocation9 + $0x18] sm:$0xff]
        %v599 = vld [vmem:[#allocation9 + $0x20] sm:$0xff]
        %v600 = vld [vmem:[#allocation9 + $0x28] sm:$0xff]
        %v601 = vld [vmem:[#allocation9 + $0x30] sm:$0xff]
        %v602 = vld [vmem:[#allocation9 + $0x38] sm:$0xff]
        %v603 = vld [vmem:[#allocation9 + $0x40] sm:$0xff]
        %v604 = vld [vmem:[#allocation9 + $0x48] sm:$0xff]
        %v605 = vld [vmem:[#allocation9 + $0x50] sm:$0xff]
        %v606 = vld [vmem:[#allocation9 + $0x58] sm:$0xff]
        %v607 = vld [vmem:[#allocation9 + $0x60] sm:$0xff]
        %v608 = vld [vmem:[#allocation9 + $0x68] sm:$0xff]
        %v609 = vld [vmem:[#allocation9 + $0x70] sm:$0xff]
        %v610 = vld [vmem:[#allocation9 + $0x78] sm:$0xff]
        %v611 = vld [vmem:[%s8] sm:$0x1]
        %v613 = vperm.slane %v611, 0
        %615 = vmatpush.msra.mxu0 %v610
        %616 = vmatpush.msra.mxu0 %v609
        %617 = vmatpush.msra.mxu0 %v608
        %618 = vmatpush.msra.mxu0 %v607
        %619 = vmatpush.msra.mxu0 %v606
        %620 = vmatpush.msra.mxu0 %v605
        %621 = vmatpush.msra.mxu0 %v604
        %622 = vmatpush.msra.mxu0 %v603
        %623 = vmatpush.msra.mxu0 %v602
        %624 = vmatpush.msra.mxu0 %v601
        %625 = vmatpush.msra.mxu0 %v600
        %626 = vmatpush.msra.mxu0 %v599
        %627 = vmatpush.msra.mxu0 %v598
        %628 = vmatpush.msra.mxu0 %v597
        %629 = vmatpush.msra.mxu0 %v596
        %630 = vmatpush.msra.mxu0 %v595
        %631 = vmatmul.f32.gmra.mxu0 %v594
        %v632 = vpop.f32.mrf.mxu0
        %v633 = vadd.f32 %v613, %v632
        %634 = vdwg.mxu0
        %635 = vst [vmem:[%s413] sm:$0xff] %v633
        %p636 = scmp.lt.s32.totalorder %s25, 1
        %s637 = scalar_select %p636, %s25, 1
        %s638 = smul.addr %s637, 8
        %s639 = scalar_lea.vmem %s9, %s638
        // Predicated region
        $region77: #{residual_mlp.1} parent=55 // pred_check
          %p640 = pneg %p237
        $region78: #{residual_mlp.1} parent=55 // pred_check_branch
          %642 = sbr.rel (%p640) target = $region80
        $region79: #{residual_mlp.1} parent=55 // pred_region
          _
        $region80: #{residual_mlp.1} parent=55 // pred_fallthru
          _
      $region56: #{residual_mlp.1} parent=5 // pred_fallthru
        _
      %p643 = scmp.le.s32.totalorder 2, %s20
      // Predicated region
      $region81: #{residual_mlp.1} parent=5 // pred_check
        %p644 = pneg %p643
      $region82: #{residual_mlp.1} parent=5 // pred_check_branch
        %646 = sbr.rel (%p644) target = $region84
      $region83: #{residual_mlp.1} parent=5 // pred_region
        %s647 = ssub.s32 %s20, 2
        // Predicated region
        $region85: #{residual_mlp.1} parent=83 // pred_check
          %p648 = pneg %p243
        $region86: #{residual_mlp.1} parent=83 // pred_check_branch
          %650 = sbr.rel (%p648) target = $region88
        $region87: #{residual_mlp.1} parent=83 // pred_region
          %p651 = scmp.lt.s32.totalorder %s26, 1
          %s652 = scalar_select %p651, %s26, 1
          %s653 = smul.addr %s652, 8
          %s654 = scalar_lea.vmem %s9, %s653
        $region88: #{residual_mlp.1} parent=83 // pred_fallthru
          _
      $region84: #{residual_mlp.1} parent=5 // pred_fallthru
        _
    $region6: #{residual_mlp.1} parent=1 // loop_footer
      %s24 = sadd.s32 1, %s20
    $region7: #{residual_mlp.1} parent=1 // loop_footer_branch
      %19 = sbr.rel target = $region3
    $region8: #{residual_mlp.1} parent=1 // loop_exit
      _
    %655 = vsyncpa [#allocation3], 1
    %s656 = scalar_lea.sflag [#allocation3], 1
    %657 = vsyncpa %s656, 1
    %658 = vsyncpa [#allocation5], 1
    %659 = vsyncpa [#allocation8], 1

</llo_original>
